<compile_context>
chip_gen: v7x
topology: tpu7x:2x2x1
jax: 0.10.0
libtpu: 0.0.40
codegen_flags: <defaults>
</compile_context>

<pallas_src>
import functools

import jax
import jax.numpy as jnp
from jax import lax
from jax.experimental import pallas as pl
from jax.experimental.pallas import tpu as pltpu

EPS = 1e-12  # torch.nn.functional.normalize default eps (clamp_min)


def _l2_normalize(x):
    # F.normalize(x, p=2, dim=-1) == x / max(||x||, eps) == x * rsqrt(max(sum(x^2), eps^2))
    sumsq = jnp.sum(x * x, axis=-1, keepdims=True)
    return x * lax.rsqrt(jnp.maximum(sumsq, EPS * EPS))


def _dot_nt(a, b):
    # a @ b.T without materializing a transpose: contract the last dim of both operands.
    return lax.dot_general(a, b, (((1,), (1,)), ((), ())),
                           preferred_element_type=jnp.float32)


def _pick_batch_tile(n, max_tile=512):
    """Largest convenient batch tile (multiple of 8) if the batch is big; else full."""
    if n <= max_tile:
        return n
    for cand in (512, 256, 128, 64, 32, 16, 8):
        if cand <= max_tile and n % cand == 0:
            return cand
    return n


# ----------------------------------------------------------------------------
# Kernel 1: 'pre-train' mode.
#   Input is the stacked CLS rows [pooled; pooled_adv] of shape (2B, D).
#   z      = tanh([pooled; pooled_adv] @ W^T + b)   -- one fused MXU pass over W
#   z_n    = l2_normalize(z)
#   x_sim  = z_n[:B] @ z_n[B:]^T
#   x_adv_sim = x_sim.T                              (z_adv_n @ z_n^T == (z_n @ z_adv_n^T)^T)
# ----------------------------------------------------------------------------
def pretrain_kernel(pooled_all_ref, w_ref, b_ref, xsim_ref, xadvsim_ref,
                    *, batch, mxu_dtype):
    p = pooled_all_ref[...]                                    # (2B, D) f32
    w = w_ref[...]                                             # (D, D)  f32
    z = _dot_nt(p.astype(mxu_dtype), w.astype(mxu_dtype))      # (2B, D) f32 acc
    z = jnp.tanh(z + b_ref[...])                               # (1, D) bias broadcasts
    z_n = _l2_normalize(z)
    z_src = z_n[:batch]
    z_adv = z_n[batch:]
    sim = _dot_nt(z_src.astype(mxu_dtype), z_adv.astype(mxu_dtype))  # (B, B)
    xsim_ref[...] = sim
    xadvsim_ref[...] = sim.T


# ----------------------------------------------------------------------------
# Kernel 2: 'init' / 'fine-tune' logits.
#   logits = l2_normalize(pooled) @ l2_normalize(label_emb)^T
#   Gridded over batch tiles of the (stacked) pooled rows; label embeddings are a
#   full (Lp, D) block (Lp = L padded to a multiple of 128 for lane-dense stores).
#   Labels are re-normalized per grid step — negligible vs. the matmul, and keeps
#   "parallel" megacore sharding trivially correct.
# ----------------------------------------------------------------------------
def classify_kernel(pooled_ref, lab_ref, logits_ref, *, mxu_dtype):
    lab_n = _l2_normalize(lab_ref[...])            # (Lp, D)  (zero pad rows stay zero)
    p_n = _l2_normalize(pooled_ref[...])           # (tb, D)
    logits_ref[...] = _dot_nt(p_n.astype(mxu_dtype), lab_n.astype(mxu_dtype))


# ----------------------------------------------------------------------------
# Wrapper (parameters of the original module, deterministically initialized)
# ----------------------------------------------------------------------------
class DecomposableClassificationPallas:

    def __init__(self, num_labels, hidden_size, key, mxu_dtype=jnp.bfloat16):
        k1, k2, k3 = jax.random.split(key, 3)
        # nn.Parameter(torch.randn(num_labels, hidden).unsqueeze(0)) -> (1, L, D)
        self.label_embeddings = jax.random.normal(
            k1, (1, num_labels, hidden_size), jnp.float32)
        # nn.Linear(hidden, hidden): weight (D, D), bias (D,) (kept as (1, D))
        bound = 1.0 / (hidden_size ** 0.5)
        self.mlp_w = jax.random.uniform(
            k2, (hidden_size, hidden_size), jnp.float32, -bound, bound)
        self.mlp_b = jax.random.uniform(
            k3, (1, hidden_size), jnp.float32, -bound, bound)
        self.num_labels = num_labels
        self.hidden_size = hidden_size
        # MXU operand dtype: bf16 by default (~2x MXU rate on v6e/v7x); accumulation
        # is always f32 via preferred_element_type. Set to jnp.float32 for bit-accuracy.
        self.mxu_dtype = mxu_dtype
        # self.pool == 'cls_before_pooler'; dropout(0.1) defined but unused in forward.

    @staticmethod
    def _cls(h):
        # 'cls_before_pooler' pooling done in the wrapper: only (B, D) ever enters
        # the pallas_call, not the full (B, S, D) encoder output.
        return h[:, 0, :]

    def _classify(self, pooled):
        Btot, D = pooled.shape
        L = self.num_labels
        Lp = ((L + 127) // 128) * 128                  # lane-dense padded label count
        lab = self.label_embeddings[0]                 # (L, D)
        lab_p = jnp.pad(lab, ((0, Lp - L), (0, 0)))    # zero rows -> zero logits, sliced off

        tb = _pick_batch_tile(Btot)
        grid = (Btot // tb,)
        kern = functools.partial(classify_kernel, mxu_dtype=self.mxu_dtype)
        out = pl.pallas_call(
            kern,
            out_shape=jax.ShapeDtypeStruct((Btot, Lp), jnp.float32),
            grid=grid,
            in_specs=[pl.BlockSpec((tb, D), lambda i: (i, 0)),
                      pl.BlockSpec((Lp, D), lambda i: (0, 0))],
            out_specs=pl.BlockSpec((tb, Lp), lambda i: (i, 0)),
            compiler_params=pltpu.CompilerParams(
                dimension_semantics=("parallel",)),
        )(pooled, lab_p)
        return out[:, :L]

    def forward(self, X, mode):
        if mode == 'pre-train':
            h, h_adv = X                                # encoder last_hidden_state, (B, S, D)
            B = h.shape[0]
            D = self.hidden_size
            # Stack src/adv CLS rows -> one fused (2B, D) MLP matmul in the kernel.
            pooled_all = jnp.concatenate([self._cls(h), self._cls(h_adv)], axis=0)
            kern = functools.partial(pretrain_kernel, batch=B, mxu_dtype=self.mxu_dtype)
            x_sim, x_adv_sim = pl.pallas_call(
                kern,
                out_shape=(jax.ShapeDtypeStruct((B, B), jnp.float32),
                           jax.ShapeDtypeStruct((B, B), jnp.float32)),
                grid=(1,),
                in_specs=[pl.BlockSpec((2 * B, D), lambda i: (0, 0)),
                          pl.BlockSpec((D, D), lambda i: (0, 0)),
                          pl.BlockSpec((1, D), lambda i: (0, 0))],
                out_specs=(pl.BlockSpec((B, B), lambda i: (0, 0)),
                           pl.BlockSpec((B, B), lambda i: (0, 0))),
                compiler_params=pltpu.CompilerParams(
                    dimension_semantics=("arbitrary",)),
            )(pooled_all, self.mlp_w, self.mlp_b)
            return x_sim, x_adv_sim

        elif mode == 'init':
            return self._classify(self._cls(X))

        elif mode == 'fine-tune':
            h, h_adv = X
            B = h.shape[0]
            # One (2B, D) @ (D, L) matmul shared between src and adv; split afterwards.
            pooled_all = jnp.concatenate([self._cls(h), self._cls(h_adv)], axis=0)
            logits_all = self._classify(pooled_all)     # (2B, L)
            return logits_all[:B], logits_all[B:]

        else:
            raise ValueError('This mode does not exist')


# ----------------------------------------------------------------------------
# Pure-JAX f32 reference (semantics check)
# ----------------------------------------------------------------------------
def _ref_norm(x):
    return x / jnp.maximum(jnp.linalg.norm(x, axis=-1, keepdims=True), EPS)


def _ref_pretrain(h, h_adv, w, b):
    p = h[:, 0, :]
    pa = h_adv[:, 0, :]
    z = jnp.tanh(p @ w.T + b)
    za = jnp.tanh(pa @ w.T + b)
    zn, zan = _ref_norm(z), _ref_norm(za)
    return zn @ zan.T, zan @ zn.T


def _ref_classify(h, lab):
    pn = _ref_norm(h[:, 0, :])
    ln = _ref_norm(lab)
    return pn @ ln.T


if __name__ == "__main__":
    key = jax.random.PRNGKey(0)
    k_model, k_h, k_ha = jax.random.split(key, 3)

    B, S, D, L = 8, 8, 128, 8  # batch, seq, hidden, num_labels

    model = DecomposableClassificationPallas(num_labels=L, hidden_size=D, key=k_model)

    # Synthetic encoder outputs (stand-ins for BERT last_hidden_state).
    h = jax.random.normal(k_h, (B, S, D), jnp.float32)
    h_adv = jax.random.normal(k_ha, (B, S, D), jnp.float32)

    r_sim, r_adv_sim = _ref_pretrain(h, h_adv, model.mlp_w, model.mlp_b)
    r_logits = _ref_classify(h, model.label_embeddings[0])
    r_logits_adv = _ref_classify(h_adv, model.label_embeddings[0])

    # ---- default path: bf16 MXU operands (v6e/v7x fast path) -> loose tolerance ----
    x_sim, x_adv_sim = model.forward((h, h_adv), 'pre-train')
    logits_init = model.forward(h, 'init')
    logits_ft, logits_ft_adv = model.forward((h, h_adv), 'fine-tune')
    jax.block_until_ready((x_sim, x_adv_sim, logits_init, logits_ft, logits_ft_adv))
    assert jnp.allclose(x_sim, r_sim, atol=3e-2)
    assert jnp.allclose(x_adv_sim, r_adv_sim, atol=3e-2)
    assert jnp.allclose(logits_init, r_logits, atol=3e-2)
    assert jnp.allclose(logits_ft, r_logits, atol=3e-2)
    assert jnp.allclose(logits_ft_adv, r_logits_adv, atol=3e-2)

    # ---- f32 MXU operands -> tight check against the f32 reference ----
    model.mxu_dtype = jnp.float32
    x_sim32, x_adv_sim32 = model.forward((h, h_adv), 'pre-train')
    logits_init32 = model.forward(h, 'init')
    logits_ft32, logits_ft_adv32 = model.forward((h, h_adv), 'fine-tune')
    jax.block_until_ready((x_sim32, x_adv_sim32, logits_init32, logits_ft32, logits_ft_adv32))
    assert jnp.allclose(x_sim32, r_sim, atol=1e-5)
    assert jnp.allclose(x_adv_sim32, r_adv_sim, atol=1e-5)
    assert jnp.allclose(logits_init32, r_logits, atol=1e-5)
    assert jnp.allclose(logits_ft32, r_logits, atol=1e-5)
    assert jnp.allclose(logits_ft_adv32, r_logits_adv, atol=1e-5)

    print("KERNEL_OK")
</pallas_src>

<mosaic_0001>
module attributes {stable_mosaic.version = 11 : i64} {
  func.func @pretrain_kernel(%arg0: i32, %arg1: memref<16x128xf32, #tpu.memory_space<vmem>>, %arg2: memref<128x128xf32, #tpu.memory_space<vmem>>, %arg3: memref<1x128xf32, #tpu.memory_space<vmem>>, %arg4: memref<8x8xf32, #tpu.memory_space<vmem>>, %arg5: memref<8x8xf32, #tpu.memory_space<vmem>>) attributes {dimension_semantics = [#tpu.dimension_semantics<arbitrary>], iteration_bounds = array<i64: 1>, scalar_prefetch = 0 : i64, scratch_operands = 0 : i64, tpu.core_type = #tpu.core_type<tc>, window_params = [{pipeline_mode = #tpu.pipeline_mode<synchronous>, transform_indices = @transform_0, window_bounds = array<i64: 16, 128>}, {pipeline_mode = #tpu.pipeline_mode<synchronous>, transform_indices = @transform_1, window_bounds = array<i64: 128, 128>}, {pipeline_mode = #tpu.pipeline_mode<synchronous>, transform_indices = @transform_2, window_bounds = array<i64: 1, 128>}, {pipeline_mode = #tpu.pipeline_mode<synchronous>, transform_indices = @transform_3, window_bounds = array<i64: 8, 8>}, {pipeline_mode = #tpu.pipeline_mode<synchronous>, transform_indices = @transform_4, window_bounds = array<i64: 8, 8>}]} {
    %c0 = arith.constant 0 : index
    %c0_0 = arith.constant 0 : index
    %0 = vector.load %arg1[%c0, %c0_0] : memref<16x128xf32, #tpu.memory_space<vmem>>, vector<16x128xf32>
    %c0_1 = arith.constant 0 : index
    %c0_2 = arith.constant 0 : index
    %1 = vector.load %arg2[%c0_1, %c0_2] : memref<128x128xf32, #tpu.memory_space<vmem>>, vector<128x128xf32>
    %2 = arith.truncf %0 : vector<16x128xf32> to vector<16x128xbf16>
    %3 = arith.truncf %1 : vector<128x128xf32> to vector<128x128xbf16>
    %cst = arith.constant dense<0.000000e+00> : vector<16x128xf32>
    %4 = tpu.matmul %2, %3, %cst {dimension_numbers = #tpu.dot_dimension_numbers<[1], [1], [0], [0], [0, 0, 1, 0], [], []>} : vector<16x128xbf16>, vector<128x128xbf16>, vector<16x128xf32> -> vector<16x128xf32>
    %c0_3 = arith.constant 0 : index
    %c0_4 = arith.constant 0 : index
    %5 = vector.load %arg3[%c0_3, %c0_4] : memref<1x128xf32, #tpu.memory_space<vmem>>, vector<1x128xf32>
    %6 = vector.broadcast %5 : vector<1x128xf32> to vector<16x128xf32>
    %7 = arith.addf %4, %6 : vector<16x128xf32>
    %8 = math.tanh %7 : vector<16x128xf32>
    %9 = arith.mulf %8, %8 : vector<16x128xf32>
    %cst_5 = arith.constant dense<0.000000e+00> : vector<16xf32>
    %10 = vector.multi_reduction <add>, %9, %cst_5 [1] : vector<16x128xf32> to vector<16xf32>
    %11 = vector.shape_cast %10 : vector<16xf32> to vector<16x1xf32>
    %cst_6 = arith.constant 1.000000e-24 : f32
    %12 = vector.broadcast %cst_6 : f32 to vector<16x1xf32>
    %13 = arith.maximumf %11, %12 : vector<16x1xf32>
    %14 = math.rsqrt %13 : vector<16x1xf32>
    %15 = vector.broadcast %14 : vector<16x1xf32> to vector<16x128xf32>
    %16 = arith.mulf %8, %15 : vector<16x128xf32>
    %17 = vector.extract_strided_slice %16 {offsets = [0, 0], sizes = [8, 128], strides = [1, 1]} : vector<16x128xf32> to vector<8x128xf32>
    %18 = vector.extract_strided_slice %16 {offsets = [8, 0], sizes = [8, 128], strides = [1, 1]} : vector<16x128xf32> to vector<8x128xf32>
    %19 = arith.truncf %17 : vector<8x128xf32> to vector<8x128xbf16>
    %20 = arith.truncf %18 : vector<8x128xf32> to vector<8x128xbf16>
    %cst_7 = arith.constant dense<0.000000e+00> : vector<8x8xf32>
    %21 = tpu.matmul %19, %20, %cst_7 {dimension_numbers = #tpu.dot_dimension_numbers<[1], [1], [0], [0], [0, 0, 1, 0], [], []>} : vector<8x128xbf16>, vector<8x128xbf16>, vector<8x8xf32> -> vector<8x8xf32>
    %c0_8 = arith.constant 0 : index
    %c0_9 = arith.constant 0 : index
    %22 = vector.load %arg4[%c0_8, %c0_9] : memref<8x8xf32, #tpu.memory_space<vmem>>, vector<8x8xf32>
    tpu.vector_store %arg4[%c0_8, %c0_9], %21 {strides = array<i32>} : memref<8x8xf32, #tpu.memory_space<vmem>>, vector<8x8xf32>,
    %23 = tpu.transpose %21, [1, 0] : vector<8x8xf32> -> vector<8x8xf32>
    %c0_10 = arith.constant 0 : index
    %c0_11 = arith.constant 0 : index
    %24 = vector.load %arg5[%c0_10, %c0_11] : memref<8x8xf32, #tpu.memory_space<vmem>>, vector<8x8xf32>
    tpu.vector_store %arg5[%c0_10, %c0_11], %23 {strides = array<i32>} : memref<8x8xf32, #tpu.memory_space<vmem>>, vector<8x8xf32>,
    return
  }
  func.func @transform_0(%arg0: i32) -> (i32, i32) {
    %c0_i32 = arith.constant 0 : i32
    %c0_i32_0 = arith.constant 0 : i32
    %c0_i32_1 = arith.constant 0 : i32
    return %c0_i32, %c0_i32_0 : i32, i32
  }
  func.func @transform_1(%arg0: i32) -> (i32, i32) {
    %c0_i32 = arith.constant 0 : i32
    %c0_i32_0 = arith.constant 0 : i32
    %c0_i32_1 = arith.constant 0 : i32
    return %c0_i32, %c0_i32_0 : i32, i32
  }
  func.func @transform_2(%arg0: i32) -> (i32, i32) {
    %c0_i32 = arith.constant 0 : i32
    %c0_i32_0 = arith.constant 0 : i32
    %c0_i32_1 = arith.constant 0 : i32
    return %c0_i32, %c0_i32_0 : i32, i32
  }
  func.func @transform_3(%arg0: i32) -> (i32, i32) {
    %c0_i32 = arith.constant 0 : i32
    %c0_i32_0 = arith.constant 0 : i32
    %c0_i32_1 = arith.constant 0 : i32
    return %c0_i32, %c0_i32_0 : i32, i32
  }
  func.func @transform_4(%arg0: i32) -> (i32, i32) {
    %c0_i32 = arith.constant 0 : i32
    %c0_i32_0 = arith.constant 0 : i32
    %c0_i32_1 = arith.constant 0 : i32
    return %c0_i32, %c0_i32_0 : i32, i32
  }
}

</mosaic_0001>

<llo_original>
// kernel: tpu_custom_call.1
$region0: #{tpu_custom_call.1}
  #allocation0 [shape = 'u32[]', space=smem, size = 0x4, offset = 0x4, fixed_abs, tag = 'smem constant byte address 0x4 - core index']
  #allocation1 [shape = 'u32[144,128]{1,0:T(1,128)}', space=vmem, size = 0x12000, scoped, tag = 'internal scratch']
  %s0 = inlined_call_operand.hbm [shape: f32[16,128], index: 0, kind: input, shape index: {}]
  %s1 = inlined_call_operand.hbm [shape: f32[128,128], index: 1, kind: input, shape index: {}]
  %s2 = inlined_call_operand.vmem [shape: f32[1,128], index: 2, kind: input, shape index: {}]
  %s3 = inlined_call_operand.hbm [shape: f32[8,8], index: 3, kind: output, shape index: {0}]
  %s4 = inlined_call_operand.hbm [shape: f32[8,8], index: 4, kind: output, shape index: {1}]
  %5 = xla_tuple %s3, %s4
  %s6 = sld [smem:[#allocation0]]
  $region38: #{tpu_custom_call.1} parent=0
    _
  %s8 = ssub.s32 1, %s6
  %s9 = scalar_select 0, %s8, %s6
  $region1: #{tpu_custom_call.1} parent=0
    #allocation2 [shape = 'u8[8192]{0}', space=vmem, size = 0x2000, scoped, tag = 'input window, operand 0, single buffered']
    #allocation3 [shape = 's32[1]{0}', space=sflag, size = 0x4, scoped, tag = 'scoped memory for tpu_custom_call.1']
    #allocation4 [shape = 's32[1]{0}', space=sflag, size = 0x4, scoped, tag = 'scoped memory for tpu_custom_call.1']
    #allocation5 [shape = 'u8[65536]{0}', space=vmem, size = 0x10000, scoped, tag = 'input window, operand 1, single buffered']
    #allocation6 [shape = 's32[1]{0}', space=sflag, size = 0x4, scoped, tag = 'scoped memory for tpu_custom_call.1']
    #allocation7 [shape = 'u8[4096]{0}', space=vmem, size = 0x1000, scoped, tag = 'output window, operand 0, single buffered']
    #allocation8 [shape = 'u8[4096]{0}', space=vmem, size = 0x1000, scoped, tag = 'output window, operand 1, single buffered']
    #allocation9 [shape = 's32[1]{0}', space=sflag, size = 0x4, scoped, tag = 'scoped memory for tpu_custom_call.1']
    %10 = vsyncpa [#allocation3], 0
    %11 = vsyncpa [#allocation6], 0
    %12 = vsyncpa [#allocation4], 0
    %13 = vsyncpa [#allocation9], 0
    // Predicated region
    $region2: #{tpu_custom_call.1} parent=1 // pred_check
      _
    $region3: #{tpu_custom_call.1} parent=1 // pred_check_branch
      %15 = sbr.rel (0) target = $region5
    $region4: #{tpu_custom_call.1} parent=1 // pred_region
      %s17 = ssub.s32 256, 256
      %18 = vsyncadd [#allocation3], %s17
      %s19 = sshll.u32 [#allocation2], 4
      %s20 = int_to_ptr.vmem [resolvable:$true] %s19
      %25 = dma.hbm_to_vmem [thread:$0]  %s0, 256, %s20, [#allocation3], 128, 128, 8
    $region5: #{tpu_custom_call.1} parent=1 // pred_fallthru
      _
    // Predicated region
    $region6: #{tpu_custom_call.1} parent=1 // pred_check
      _
    $region7: #{tpu_custom_call.1} parent=1 // pred_check_branch
      %27 = sbr.rel (0) target = $region9
    $region8: #{tpu_custom_call.1} parent=1 // pred_region
      %s29 = ssub.s32 2048, 2048
      %30 = vsyncadd [#allocation6], %s29
      %s31 = sshll.u32 [#allocation5], 4
      %s32 = int_to_ptr.vmem [resolvable:$true] %s31
      %37 = dma.hbm_to_vmem [thread:$0]  %s1, 2048, %s32, [#allocation6], 128, 128, 8
    $region9: #{tpu_custom_call.1} parent=1 // pred_fallthru
      _
    // Predicated region
    $region10: #{tpu_custom_call.1} parent=1 // pred_check
      _
    $region11: #{tpu_custom_call.1} parent=1 // pred_check_branch
      %39 = sbr.rel (0) target = $region13
    $region12: #{tpu_custom_call.1} parent=1 // pred_region
      _
    $region13: #{tpu_custom_call.1} parent=1 // pred_fallthru
      _
    // Predicated region
    $region14: #{tpu_custom_call.1} parent=1 // pred_check
      _
    $region15: #{tpu_custom_call.1} parent=1 // pred_check_branch
      %41 = sbr.rel (0) target = $region17
    $region16: #{tpu_custom_call.1} parent=1 // pred_region
      %42 = dma.done [#allocation3], 256
    $region17: #{tpu_custom_call.1} parent=1 // pred_fallthru
      _
    // Predicated region
    $region18: #{tpu_custom_call.1} parent=1 // pred_check
      _
    $region19: #{tpu_custom_call.1} parent=1 // pred_check_branch
      %44 = sbr.rel (0) target = $region21
    $region20: #{tpu_custom_call.1} parent=1 // pred_region
      %45 = dma.done [#allocation6], 2048
    $region21: #{tpu_custom_call.1} parent=1 // pred_fallthru
      _
    %v47 = vld [vmem:[#allocation2] sm:$0xff]
    %v48 = vld [vmem:[#allocation2 + $0x8] sm:$0xff]
    %v49 = vld [vmem:[#allocation5] sm:$0xff]
    %v50 = vld [vmem:[#allocation5 + $0x8] sm:$0xff]
    %v51 = vld [vmem:[#allocation5 + $0x10] sm:$0xff]
    %v52 = vld [vmem:[#allocation5 + $0x18] sm:$0xff]
    %v53 = vld [vmem:[#allocation5 + $0x20] sm:$0xff]
    %v54 = vld [vmem:[#allocation5 + $0x28] sm:$0xff]
    %v55 = vld [vmem:[#allocation5 + $0x30] sm:$0xff]
    %v56 = vld [vmem:[#allocation5 + $0x38] sm:$0xff]
    %v57 = vld [vmem:[#allocation5 + $0x40] sm:$0xff]
    %v58 = vld [vmem:[#allocation5 + $0x48] sm:$0xff]
    %v59 = vld [vmem:[#allocation5 + $0x50] sm:$0xff]
    %v60 = vld [vmem:[#allocation5 + $0x58] sm:$0xff]
    %v61 = vld [vmem:[#allocation5 + $0x60] sm:$0xff]
    %v62 = vld [vmem:[#allocation5 + $0x68] sm:$0xff]
    %v63 = vld [vmem:[#allocation5 + $0x70] sm:$0xff]
    %v64 = vld [vmem:[#allocation5 + $0x78] sm:$0xff]
    %v65 = vpack.c.bf16 %v48, %v47
    %v66 = vpack.c.bf16 %v50, %v49
    %v67 = vpack.c.bf16 %v52, %v51
    %v68 = vpack.c.bf16 %v54, %v53
    %v69 = vpack.c.bf16 %v56, %v55
    %v70 = vpack.c.bf16 %v58, %v57
    %v71 = vpack.c.bf16 %v60, %v59
    %v72 = vpack.c.bf16 %v62, %v61
    %v73 = vpack.c.bf16 %v64, %v63
    %v74 = vld [vmem:[%s2] sm:$0x1]
    %v76 = vlaneseq
    %v77 = vshrl.u32 %v76, 7
    %v78 = vsub.s32 0, %v77
    %v79 = vrot.slane %v74, %v78
    %81 = vmatprep.subr.bf16.mxu0 0
    %82 = vmatpush1.bf16.xpose.msra.mxu0 %v66
    %83 = vmatprep.subr.bf16.mxu0 0
    %84 = vmatpush1.bf16.xpose.msra.mxu0 %v67
    %85 = vmatprep.subr.bf16.mxu0 0
    %86 = vmatpush1.bf16.xpose.msra.mxu0 %v68
    %87 = vmatprep.subr.bf16.mxu0 0
    %88 = vmatpush1.bf16.xpose.msra.mxu0 %v69
    %89 = vmatprep.subr.bf16.mxu0 0
    %90 = vmatpush1.bf16.xpose.msra.mxu0 %v70
    %91 = vmatprep.subr.bf16.mxu0 0
    %92 = vmatpush1.bf16.xpose.msra.mxu0 %v71
    %93 = vmatprep.subr.bf16.mxu0 0
    %94 = vmatpush1.bf16.xpose.msra.mxu0 %v72
    %95 = vmatprep.subr.bf16.mxu0 0
    %96 = vmatpush1.bf16.xpose.msra.mxu0 %v73
    %97 = vmatprep.subr.bf16.mxu0 0
    %98 = vmatpush1.bf16.xpose.msra.mxu0 0
    %99 = vmatprep.subr.bf16.mxu0 0
    %100 = vmatpush1.bf16.xpose.msra.mxu0 0
    %101 = vmatprep.subr.bf16.mxu0 0
    %102 = vmatpush1.bf16.xpose.msra.mxu0 0
    %103 = vmatprep.subr.bf16.mxu0 0
    %104 = vmatpush1.bf16.xpose.msra.mxu0 0
    %105 = vmatprep.subr.bf16.mxu0 0
    %106 = vmatpush1.bf16.xpose.msra.mxu0 0
    %107 = vmatprep.subr.bf16.mxu0 0
    %108 = vmatpush1.bf16.xpose.msra.mxu0 0
    %109 = vmatprep.subr.bf16.mxu0 0
    %110 = vmatpush1.bf16.xpose.msra.mxu0 0
    %111 = vmatprep.subr.bf16.mxu0 0
    %112 = vmatpush1.bf16.xpose.msra.mxu0 0
    %113 = vmatprep.mubr.bf16.mxu0 0
    %114 = vmatmul.mubr.bf16.gmra.mrb[0].mxu0 %v65
    %v115 = vpop.f32.mrb[0].mxu0
    %v116 = vadd.f32 %v79, %v115
    %v117 = vpop.f32.mrb[0].mxu0
    %v118 = vpop.f32.mrb[0].mxu0
    %v119 = vadd.f32 %v79, %v118
    %v120 = vpop.f32.mrb[0].mxu0
    %121 = vdwg.mxu0
    %v122 = vtanh.pop %v116
    %v123 = vtanh.pop %v119
    %v124 = vmul.f32 %v122, %v122
    %v125 = vmul.f32 %v123, %v123
    %126 = vadd.xlane.f32.xlu0 %v124
    %v127 = vpop.xlane.xlu0 %126
    %128 = vadd.xlane.f32.xlu0 %v125
    %v129 = vpop.xlane.xlu0 %128
    %v130 = vmax.f32 %v127, 1e-24
    %v131 = vmax.f32 %v129, 1e-24
    %v132 = vrsqrt.pop %v130
    %v133 = vrsqrt.pop %v131
    %v134 = vmul.f32 %v122, %v132
    %v135 = vmul.f32 %v123, %v133
    %v136 = vpack.c.bf16 %v134, %v134
    %v137 = vpack.c.bf16 %v135, %v135
    %138 = vmatprep.subr.bf16.mxu0 0
    %139 = vmatpush1.bf16.xpose.msra.mxu0 %v137
    %140 = vmatprep.subr.bf16.mxu0 0
    %141 = vmatpush1.bf16.xpose.msra.mxu0 0
    %142 = vmatprep.subr.bf16.mxu0 0
    %143 = vmatpush1.bf16.xpose.msra.mxu0 0
    %144 = vmatprep.subr.bf16.mxu0 0
    %145 = vmatpush1.bf16.xpose.msra.mxu0 0
    %146 = vmatprep.subr.bf16.mxu0 0
    %147 = vmatpush1.bf16.xpose.msra.mxu0 0
    %148 = vmatprep.subr.bf16.mxu0 0
    %149 = vmatpush1.bf16.xpose.msra.mxu0 0
    %150 = vmatprep.subr.bf16.mxu0 0
    %151 = vmatpush1.bf16.xpose.msra.mxu0 0
    %152 = vmatprep.subr.bf16.mxu0 0
    %153 = vmatpush1.bf16.xpose.msra.mxu0 0
    %154 = vmatprep.subr.bf16.mxu0 0
    %155 = vmatpush1.bf16.xpose.msra.mxu0 0
    %156 = vmatprep.subr.bf16.mxu0 0
    %157 = vmatpush1.bf16.xpose.msra.mxu0 0
    %158 = vmatprep.subr.bf16.mxu0 0
    %159 = vmatpush1.bf16.xpose.msra.mxu0 0
    %160 = vmatprep.subr.bf16.mxu0 0
    %161 = vmatpush1.bf16.xpose.msra.mxu0 0
    %162 = vmatprep.subr.bf16.mxu0 0
    %163 = vmatpush1.bf16.xpose.msra.mxu0 0
    %164 = vmatprep.subr.bf16.mxu0 0
    %165 = vmatpush1.bf16.xpose.msra.mxu0 0
    %166 = vmatprep.subr.bf16.mxu0 0
    %167 = vmatpush1.bf16.xpose.msra.mxu0 0
    %168 = vmatprep.subr.bf16.mxu0 0
    %169 = vmatpush1.bf16.xpose.msra.mxu0 0
    %170 = vmatprep.mubr.bf16.mxu0 0
    %171 = vmatmul.mubr.bf16.gmra.mrb[0].mxu0 %v136
    %v172 = vpop.f32.mrb[0].mxu0
    %v173 = vadd.f32 0.0, %v172
    %v174 = vpop.f32.mrb[0].mxu0
    %v175 = vpop.f32.mrb[0].mxu0
    %v176 = vpop.f32.mrb[0].mxu0
    %177 = vdwg.mxu0
    %vm178 = vcmask 64512
    %179 = vst.msk [vmem:[#allocation7] sm:$0xff] %vm178, %v173
    %180 = vxpose.xlu0.b32.start [1/16] %v173, 128
    %181 = vxpose.xlu0.b32.cont [2/16] 0.0, 128
    %182 = vxpose.xlu0.b32.cont [3/16] 0.0, 128
    %183 = vxpose.xlu0.b32.cont [4/16] 0.0, 128
    %184 = vxpose.xlu0.b32.cont [5/16] 0.0, 128
    %185 = vxpose.xlu0.b32.cont [6/16] 0.0, 128
    %186 = vxpose.xlu0.b32.cont [7/16] 0.0, 128
    %187 = vxpose.xlu0.b32.cont [8/16] 0.0, 128
    %188 = vxpose.xlu0.b32.cont [9/16] 0.0, 128
    %189 = vxpose.xlu0.b32.cont [10/16] 0.0, 128
    %190 = vxpose.xlu0.b32.cont [11/16] 0.0, 128
    %191 = vxpose.xlu0.b32.cont [12/16] 0.0, 128
    %192 = vxpose.xlu0.b32.cont [13/16] 0.0, 128
    %193 = vxpose.xlu0.b32.cont [14/16] 0.0, 128
    %194 = vxpose.xlu0.b32.cont [15/16] 0.0, 128
    %195 = vxpose.xlu0.b32.end [16/16] 0.0, 128
    %v196 = vpop.trf.xlu0
    %v197 = vpop.trf.xlu0
    %v198 = vpop.trf.xlu0
    %v199 = vpop.trf.xlu0
    %v200 = vpop.trf.xlu0
    %v201 = vpop.trf.xlu0
    %v202 = vpop.trf.xlu0
    %v203 = vpop.trf.xlu0
    %v204 = vpop.trf.xlu0
    %v205 = vpop.trf.xlu0
    %v206 = vpop.trf.xlu0
    %v207 = vpop.trf.xlu0
    %v208 = vpop.trf.xlu0
    %v209 = vpop.trf.xlu0
    %v210 = vpop.trf.xlu0
    %v211 = vpop.trf.xlu0
    %212 = vst.msk [vmem:[#allocation8] sm:$0xff] %vm178, %v196
    // Predicated region
    $region22: #{tpu_custom_call.1} parent=1 // pred_check
      _
    $region23: #{tpu_custom_call.1} parent=1 // pred_check_branch
      %214 = sbr.rel (0) target = $region25
    $region24: #{tpu_custom_call.1} parent=1 // pred_region
      %s216 = ssub.s32 128, 128
      %217 = vsyncadd [#allocation4], %s216
      %s219 = sshll.u32 [#allocation7], 4
      %s220 = int_to_ptr.vmem [resolvable:$true] %s219
      %222 = dma.vmem_to_hbm [thread:$0]  %s220, 128, %s3, [#allocation4]
    $region25: #{tpu_custom_call.1} parent=1 // pred_fallthru
      _
    // Predicated region
    $region26: #{tpu_custom_call.1} parent=1 // pred_check
      _
    $region27: #{tpu_custom_call.1} parent=1 // pred_check_branch
      %224 = sbr.rel (0) target = $region29
    $region28: #{tpu_custom_call.1} parent=1 // pred_region
      %s226 = ssub.s32 128, 128
      %227 = vsyncadd [#allocation9], %s226
      %s229 = sshll.u32 [#allocation8], 4
      %s230 = int_to_ptr.vmem [resolvable:$true] %s229
      %232 = dma.vmem_to_hbm [thread:$0]  %s230, 128, %s4, [#allocation9]
    $region29: #{tpu_custom_call.1} parent=1 // pred_fallthru
      _
    // Predicated region
    $region30: #{tpu_custom_call.1} parent=1 // pred_check
      _
    $region31: #{tpu_custom_call.1} parent=1 // pred_check_branch
      %234 = sbr.rel (0) target = $region33
    $region32: #{tpu_custom_call.1} parent=1 // pred_region
      %235 = dma.done [#allocation4], 128
    $region33: #{tpu_custom_call.1} parent=1 // pred_fallthru
      _
    // Predicated region
    $region34: #{tpu_custom_call.1} parent=1 // pred_check
      _
    $region35: #{tpu_custom_call.1} parent=1 // pred_check_branch
      %237 = sbr.rel (0) target = $region37
    $region36: #{tpu_custom_call.1} parent=1 // pred_region
      %238 = dma.done [#allocation9], 128
    $region37: #{tpu_custom_call.1} parent=1 // pred_fallthru
      _
    %239 = vsyncpa [#allocation3], 1
    %240 = vsyncpa [#allocation6], 1
    %241 = vsyncpa [#allocation4], 1
    %242 = vsyncpa [#allocation9], 1

</llo_original>
